<compile_context>
chip_gen: v7x
topology: tpu7x:2x2x1
jax: 0.10.0
libtpu: 0.0.40
codegen_flags: <defaults>
</compile_context>

<pallas_src>
import functools

import jax
import jax.numpy as jnp
from jax import lax
from jax.experimental import pallas as pl
from jax.experimental.pallas import tpu as pltpu

_LANES = 128
_SUBLANES = 8


# ---------------------------------------------------------------------------
# Kernels
# ---------------------------------------------------------------------------
def _bce_single_kernel(x_ref, t_ref, out_ref, *, n_valid, exact, size_average):
    """Whole-array-in-VMEM path (no grid)."""
    x = x_ref[...].astype(jnp.float32)
    t = t_ref[...].astype(jnp.float32)

    # Numerically stable binary_cross_entropy_with_logits (elementwise).
    per_elem = jnp.maximum(x, 0.0) - x * t + jnp.log1p(jnp.exp(-jnp.abs(x)))
    pos_elem = jnp.where(t != 0.0, 1.0, 0.0)

    if not exact:
        # Row/lane based validity (no int32 flat-index overflow risk).
        full_rows = n_valid // _LANES          # static
        rem = n_valid % _LANES                 # static
        grow = lax.broadcasted_iota(jnp.int32, x.shape, 0)
        valid = grow < full_rows
        if rem:
            lane = lax.broadcasted_iota(jnp.int32, x.shape, 1)
            valid = valid | ((grow == full_rows) & (lane < rem))
        per_elem = jnp.where(valid, per_elem, 0.0)
        pos_elem = jnp.where(valid, pos_elem, 0.0)

    loss_sum = jnp.sum(per_elem)               # reduction 1
    pos = jnp.sum(pos_elem)                    # reduction 2
    neg = jnp.float32(n_valid) - pos
    neg = jnp.where(neg > 0.0, neg, 1.0)       # PyTorch module default neg_count = 1
    w = pos / neg

    if size_average:
        out_ref[0, 0] = w * loss_sum * (1.0 / n_valid)
    else:
        out_ref[0, 0] = w * loss_sum


def _bce_tiled_kernel(x_ref, t_ref, out_ref, *, n_valid, exact, block_rows,
                      blocks_per_core, full_blocks):
    """Grid-tiled reduction. Grid = (num_core_slices, blocks_per_core).

    The output block (2, 8, 128) is the accumulator (revisited across the
    "arbitrary" inner axis): row 0 = per-(sublane,lane) loss partial sums,
    row 1 = positive-count partial sums.  The final cross-sublane/lane reduce,
    the weight w and the mean are computed in the wrapper.
    """
    c = pl.program_id(0)          # core-slice index ("parallel")
    i = pl.program_id(1)          # block index within the slice ("arbitrary")

    @pl.when(i == 0)
    def _():
        out_ref[...] = jnp.zeros_like(out_ref)

    x = x_ref[...].astype(jnp.float32)
    t = t_ref[...].astype(jnp.float32)

    per_elem = jnp.maximum(x, 0.0) - x * t + jnp.log1p(jnp.exp(-jnp.abs(x)))
    pos_elem = jnp.where(t != 0.0, 1.0, 0.0)

    def accumulate(pe, po):
        # (block_rows,128) -> (block_rows//8, 8, 128) is a tile-aligned split;
        # the axis-0 sum is pure full-vreg vadds (no per-step XLU work).
        out_ref[0, :, :] += jnp.sum(
            pe.reshape(block_rows // _SUBLANES, _SUBLANES, _LANES), axis=0)
        out_ref[1, :, :] += jnp.sum(
            po.reshape(block_rows // _SUBLANES, _SUBLANES, _LANES), axis=0)

    if exact:
        accumulate(per_elem, pos_elem)
    else:
        gblk = c * blocks_per_core + i         # virtual global block index
        is_clean = gblk < full_blocks          # block is entirely valid data

        @pl.when(is_clean)
        def _():
            accumulate(per_elem, pos_elem)

        @pl.when(jnp.logical_not(is_clean))
        def _():
            # Only the tail / phantom blocks pay for iota + compare + select.
            full_rows = n_valid // _LANES      # static
            rem = n_valid % _LANES             # static
            grow = gblk * block_rows + lax.broadcasted_iota(
                jnp.int32, per_elem.shape, 0)
            valid = grow < full_rows
            if rem:
                lane = lax.broadcasted_iota(jnp.int32, per_elem.shape, 1)
                valid = valid | ((grow == full_rows) & (lane < rem))
            accumulate(jnp.where(valid, per_elem, 0.0),
                       jnp.where(valid, pos_elem, 0.0))


# ---------------------------------------------------------------------------
# Wrapper
# ---------------------------------------------------------------------------
def bce_loss_weighted(logits, target, size_average=True, block_rows=2048):
    """Pallas implementation of BCELossWeighted.forward(input, target).

    Inputs may be any float (logits) / float-or-int (target) dtype; they are
    streamed at their HBM dtype and upcast to f32 in vregs, so supplying bf16
    logits / int8 targets directly cuts HBM traffic (the kernel is HBM-bound).

    block_rows: rows-of-128-lanes per grid step for the tiled path.  2048 rows
    = 1 MiB f32 per input per buffer (4 MiB double-buffered for both streams),
    comfortably inside every generation's scoped-VMEM default while amortizing
    per-grid-step overhead and the accumulator update.
    """
    assert logits.shape == target.shape
    assert block_rows % _SUBLANES == 0 and block_rows >= _SUBLANES
    n = int(logits.size)
    rows = pl.cdiv(n, _LANES)

    itemsize = logits.dtype.itemsize + target.dtype.itemsize
    cost = pl.CostEstimate(flops=6 * n, transcendentals=2 * n,
                           bytes_accessed=int(n * itemsize + 64))

    # ---- small path: one whole-array VMEM block, no grid --------------------
    if rows <= max(block_rows, _SUBLANES):
        if n % _LANES == 0:
            x2 = logits.reshape(rows, _LANES)      # free row-major reshape
            t2 = target.reshape(rows, _LANES)
            exact = True
        else:
            pad = rows * _LANES - n
            x2 = jnp.pad(logits.reshape(-1), (0, pad)).reshape(rows, _LANES)
            t2 = jnp.pad(target.reshape(-1), (0, pad)).reshape(rows, _LANES)
            exact = False

        kernel = functools.partial(_bce_single_kernel, n_valid=n, exact=exact,
                                   size_average=size_average)
        out = pl.pallas_call(
            kernel,
            out_shape=jax.ShapeDtypeStruct((1, 1), jnp.float32),
            in_specs=[pl.BlockSpec(memory_space=pltpu.MemorySpace.VMEM),
                      pl.BlockSpec(memory_space=pltpu.MemorySpace.VMEM)],
            out_specs=pl.BlockSpec(memory_space=pltpu.MemorySpace.SMEM),
            cost_estimate=cost,
        )(x2, t2)
        return out[0, 0]

    # ---- large path: tiled grid reduction ------------------------------------
    if n % _LANES == 0:
        # Zero-copy: reshape only, no pad.  Partial / phantom trailing grid
        # blocks are handled by in-kernel masking of their garbage rows.
        x2 = logits.reshape(rows, _LANES)
        t2 = target.reshape(rows, _LANES)
    else:
        # TODO(synk): handle the <128-element ragged tail with a tiny side
        # computation instead of this whole-array pad copy.
        pad = rows * _LANES - n
        x2 = jnp.pad(logits.reshape(-1), (0, pad)).reshape(rows, _LANES)
        t2 = jnp.pad(target.reshape(-1), (0, pad)).reshape(rows, _LANES)

    total_blocks = pl.cdiv(rows, block_rows)
    # Split the block range across v7x's two TensorCores via a leading
    # "parallel" grid axis.  Skip the split for small odd block counts, where
    # the single wasted phantom block would cost a noticeable fraction of the
    # work on 1-TC chips (v5e / v6e).
    nc = 2 if (total_blocks % 2 == 0 or total_blocks >= 8) else 1
    bpc = pl.cdiv(total_blocks, nc)
    max_blk = total_blocks - 1
    full_blocks = n // (block_rows * _LANES)           # fully-valid blocks
    exact = (nc * bpc * block_rows * _LANES == n)

    def in_map(c, i):
        # Clamp the (at most one) phantom block to the last real block so its
        # DMA never goes out of bounds; the kernel masks its contribution to 0.
        return (jnp.minimum(c * bpc + i, max_blk), 0)

    kernel = functools.partial(_bce_tiled_kernel, n_valid=n, exact=exact,
                               block_rows=block_rows, blocks_per_core=bpc,
                               full_blocks=full_blocks)

    cp_kwargs = dict(dimension_semantics=("parallel", "arbitrary"))
    # v5e's default scoped-VMEM limit is 16 MiB (vs 32 MiB on v6e/v7x); raise
    # it explicitly when a user-supplied block_rows needs more.
    vmem_need = (2 * block_rows * _LANES * itemsize            # dbl-buffered inputs
                 + 6 * block_rows * _LANES * 4                 # f32 temporaries
                 + (1 << 20))
    if vmem_need > (16 << 20):
        cp_kwargs["vmem_limit_bytes"] = int(min(vmem_need, 48 << 20))

    partials = pl.pallas_call(
        kernel,
        out_shape=jax.ShapeDtypeStruct((2 * nc, _SUBLANES, _LANES), jnp.float32),
        grid=(nc, bpc),
        in_specs=[pl.BlockSpec((block_rows, _LANES), in_map),
                  pl.BlockSpec((block_rows, _LANES), in_map)],
        out_specs=pl.BlockSpec((2, _SUBLANES, _LANES), lambda c, i: (c, 0, 0)),
        compiler_params=pltpu.CompilerParams(**cp_kwargs),
        cost_estimate=cost,
    )(x2, t2)

    # Tiny scalar combine (per-core partials -> w, mean/sum) in the wrapper.
    loss_sum = jnp.sum(partials[0::2])
    pos = jnp.sum(partials[1::2])
    neg = jnp.float32(n) - pos
    neg = jnp.where(neg > 0.0, neg, 1.0)       # PyTorch module default neg_count = 1
    w = pos / neg
    out = w * loss_sum
    return out / n if size_average else out


# ---------------------------------------------------------------------------
# Pure-JAX reference mirroring the PyTorch module
# ---------------------------------------------------------------------------
def _reference(logits, target, size_average=True):
    x = logits.astype(jnp.float32)
    t = target.astype(jnp.float32)
    pos = jnp.sum(t != 0.0).astype(jnp.float32)
    neg = jnp.sum(t == 0.0).astype(jnp.float32)
    neg = jnp.where(neg > 0.0, neg, 1.0)
    w = pos / neg
    per_elem = jnp.maximum(x, 0.0) - x * t + jnp.log1p(jnp.exp(-jnp.abs(x)))
    loss = w * per_elem
    return jnp.mean(loss) if size_average else jnp.sum(loss)


if __name__ == "__main__":
    key = jax.random.PRNGKey(0)
    k1, k2, k3, k4, k5, k6 = jax.random.split(key, 6)

    # NCHW inputs, as the segmentation loss expects: (batch, channels, H, W)
    # 2*4*16*16 = 2048 = 16*128 -> exact-fit zero-copy fast path.
    x = jax.random.normal(k1, (2, 4, 16, 16), dtype=jnp.float32)
    t = (jax.random.uniform(k2, (2, 4, 16, 16)) > 0.7).astype(jnp.float32)

    out = jax.block_until_ready(bce_loss_weighted(x, t, size_average=True))
    ref = _reference(x, t, size_average=True)
    assert jnp.allclose(out, ref, rtol=1e-5, atol=1e-5), (out, ref)

    # size_average=False (sum reduction).
    out_s = jax.block_until_ready(bce_loss_weighted(x, t, size_average=False))
    ref_s = _reference(x, t, size_average=False)
    assert jnp.allclose(out_s, ref_s, rtol=2e-5, atol=1e-3), (out_s, ref_s)

    # Tiled (grid) path with the 2-way core split, exact-fit blocks.
    out_t = jax.block_until_ready(bce_loss_weighted(x, t, block_rows=8))
    assert jnp.allclose(out_t, ref, rtol=1e-5, atol=1e-5), (out_t, ref)

    # Non-multiple-of-128 element count -> in-kernel mask (single block).
    x2 = jax.random.normal(k3, (2, 3, 15, 17), dtype=jnp.float32)
    t2 = (jax.random.uniform(k4, (2, 3, 15, 17)) > 0.6).astype(jnp.float32)
    out2 = jax.block_until_ready(bce_loss_weighted(x2, t2))
    ref2 = _reference(x2, t2)
    assert jnp.allclose(out2, ref2, rtol=1e-5, atol=1e-5), (out2, ref2)

    # Non-multiple-of-128 + tiled path: only the tail block is masked.
    out3 = jax.block_until_ready(bce_loss_weighted(x2, t2, block_rows=8))
    assert jnp.allclose(out3, ref2, rtol=1e-5, atol=1e-5), (out3, ref2)

    # Odd block count (9 blocks) -> one clamped phantom block on core slice 1.
    x3 = jax.random.normal(k5, (2, 4, 18, 64), dtype=jnp.float32)
    t3 = (jax.random.uniform(k6, (2, 4, 18, 64)) > 0.5).astype(jnp.float32)
    out4 = jax.block_until_ready(bce_loss_weighted(x3, t3, block_rows=8))
    ref4 = _reference(x3, t3)
    assert jnp.allclose(out4, ref4, rtol=1e-5, atol=1e-5), (out4, ref4)

    # bf16 logits stream (kernel upcasts in vregs; halves logits HBM traffic).
    out5 = jax.block_until_ready(bce_loss_weighted(x.astype(jnp.bfloat16), t))
    ref5 = _reference(x.astype(jnp.bfloat16), t)
    assert jnp.allclose(out5, ref5, rtol=1e-5, atol=1e-5), (out5, ref5)

    print("KERNEL_OK")
</pallas_src>

<mosaic_0001>
module attributes {stable_mosaic.version = 11 : i64} {
  func.func @_bce_single_kernel(%arg0: memref<16x128xf32, #tpu.memory_space<vmem>>, %arg1: memref<16x128xf32, #tpu.memory_space<vmem>>, %arg2: memref<1x1xf32, #tpu.memory_space<smem>>) attributes {dimension_semantics = [], scalar_prefetch = 0 : i64, scratch_operands = 0 : i64, tpu.core_type = #tpu.core_type<tc>} {
    %c0 = arith.constant 0 : index
    %c0_0 = arith.constant 0 : index
    %0 = vector.load %arg0[%c0, %c0_0] : memref<16x128xf32, #tpu.memory_space<vmem>>, vector<16x128xf32>
    %c0_1 = arith.constant 0 : index
    %c0_2 = arith.constant 0 : index
    %1 = vector.load %arg1[%c0_1, %c0_2] : memref<16x128xf32, #tpu.memory_space<vmem>>, vector<16x128xf32>
    %cst = arith.constant 0.000000e+00 : f32
    %2 = vector.broadcast %cst : f32 to vector<16x128xf32>
    %3 = arith.maximumf %0, %2 : vector<16x128xf32>
    %4 = arith.mulf %0, %1 : vector<16x128xf32>
    %5 = arith.subf %3, %4 : vector<16x128xf32>
    %6 = math.absf %0 : vector<16x128xf32>
    %cst_3 = arith.constant 0.000000e+00 : f32
    %7 = vector.broadcast %cst_3 : f32 to vector<16x128xf32>
    %8 = arith.subf %7, %6 : vector<16x128xf32>
    %9 = math.exp %8 : vector<16x128xf32>
    %10 = math.log1p %9 : vector<16x128xf32>
    %11 = arith.addf %5, %10 : vector<16x128xf32>
    %cst_4 = arith.constant 0.000000e+00 : f32
    %12 = vector.broadcast %cst_4 : f32 to vector<16x128xf32>
    %13 = arith.cmpf one, %1, %12 : vector<16x128xf32>
    %cst_5 = arith.constant 1.000000e+00 : f32
    %cst_6 = arith.constant 0.000000e+00 : f32
    %14 = vector.broadcast %cst_5 : f32 to vector<16x128xf32>
    %15 = vector.broadcast %cst_6 : f32 to vector<16x128xf32>
    %16 = arith.select %13, %14, %15 : vector<16x128xi1>, vector<16x128xf32>
    %17 = vector.shape_cast %11 : vector<16x128xf32> to vector<1x16x128xf32>
    %cst_7 = arith.constant dense<0.000000e+00> : vector<1xf32>
    %18 = vector.multi_reduction <add>, %17, %cst_7 [1, 2] : vector<1x16x128xf32> to vector<1xf32>
    %19 = vector.shape_cast %18 : vector<1xf32> to vector<1x1x1xf32>
    %20 = vector.extract %19[0, 0, 0] : f32 from vector<1x1x1xf32>
    %21 = vector.shape_cast %16 : vector<16x128xf32> to vector<1x16x128xf32>
    %cst_8 = arith.constant dense<0.000000e+00> : vector<1xf32>
    %22 = vector.multi_reduction <add>, %21, %cst_8 [1, 2] : vector<1x16x128xf32> to vector<1xf32>
    %23 = vector.shape_cast %22 : vector<1xf32> to vector<1x1x1xf32>
    %24 = vector.extract %23[0, 0, 0] : f32 from vector<1x1x1xf32>
    %cst_9 = arith.constant 2.048000e+03 : f32
    %25 = arith.subf %cst_9, %24 : f32
    %cst_10 = arith.constant 0.000000e+00 : f32
    %26 = arith.cmpf ogt, %25, %cst_10 : f32
    %cst_11 = arith.constant 1.000000e+00 : f32
    %27 = arith.select %26, %25, %cst_11 : f32
    %28 = arith.divf %24, %27 : f32
    %29 = arith.mulf %28, %20 : f32
    %cst_12 = arith.constant 4.8828125E-4 : f32
    %30 = arith.mulf %29, %cst_12 : f32
    %c0_13 = arith.constant 0 : index
    %c0_14 = arith.constant 0 : index
    %31 = memref.load %arg2[%c0_13, %c0_14] : memref<1x1xf32, #tpu.memory_space<smem>>
    memref.store %30, %arg2[%c0_13, %c0_14] : memref<1x1xf32, #tpu.memory_space<smem>>
    return
  }
}

</mosaic_0001>

<llo_original>
// kernel: tpu_custom_call.1
$region0: #{tpu_custom_call.1}
  #allocation0 [shape = 'u32[]', space=smem, size = 0x4, offset = 0x4, fixed_abs, tag = 'smem constant byte address 0x4 - core index']
  #allocation1 [shape = 'u32[144,128]{1,0:T(1,128)}', space=vmem, size = 0x12000, scoped, tag = 'internal scratch']
  %s0 = inlined_call_operand.hbm [shape: f32[16,128], index: 0, kind: input, shape index: {}]
  %s1 = inlined_call_operand.hbm [shape: f32[16,128], index: 1, kind: input, shape index: {}]
  %s2 = inlined_call_operand.hbm [shape: f32[1,1], index: 2, kind: output, shape index: {}]
  %s3 = sld [smem:[#allocation0]]
  $region26: #{tpu_custom_call.1} parent=0
    _
  %s5 = ssub.s32 1, %s3
  %s6 = scalar_select 0, %s5, %s3
  $region1: #{tpu_custom_call.1} parent=0
    #allocation2 [shape = 'u8[8192]{0}', space=vmem, size = 0x2000, scoped, tag = 'input window, operand 0, single buffered']
    #allocation3 [shape = 's32[1]{0}', space=sflag, size = 0x4, scoped, tag = 'scoped memory for tpu_custom_call.1']
    #allocation4 [shape = 's32[1]{0}', space=sflag, size = 0x4, scoped, tag = 'scoped memory for tpu_custom_call.1']
    #allocation5 [shape = 'u8[8192]{0}', space=vmem, size = 0x2000, scoped, tag = 'input window, operand 1, single buffered']
    #allocation6 [shape = 's32[1]{0}', space=sflag, size = 0x4, scoped, tag = 'scoped memory for tpu_custom_call.1']
    #allocation7 [shape = 'u8[512]{0}', space=smem, size = 0x200, scoped, tag = 'output window, operand 0, single buffered']
    %7 = vsyncpa [#allocation3], 0
    %8 = vsyncpa [#allocation6], 0
    %9 = vsyncpa [#allocation4], 0
    // Predicated region
    $region2: #{tpu_custom_call.1} parent=1 // pred_check
      _
    $region3: #{tpu_custom_call.1} parent=1 // pred_check_branch
      %11 = sbr.rel (0) target = $region5
    $region4: #{tpu_custom_call.1} parent=1 // pred_region
      %s13 = ssub.s32 256, 256
      %14 = vsyncadd [#allocation3], %s13
      %s15 = sshll.u32 [#allocation2], 4
      %s16 = int_to_ptr.vmem [resolvable:$true] %s15
      %21 = dma.hbm_to_vmem [thread:$0]  %s0, 256, %s16, [#allocation3], 128, 128, 8
    $region5: #{tpu_custom_call.1} parent=1 // pred_fallthru
      _
    // Predicated region
    $region6: #{tpu_custom_call.1} parent=1 // pred_check
      _
    $region7: #{tpu_custom_call.1} parent=1 // pred_check_branch
      %23 = sbr.rel (0) target = $region9
    $region8: #{tpu_custom_call.1} parent=1 // pred_region
      %s25 = ssub.s32 256, 256
      %26 = vsyncadd [#allocation6], %s25
      %s27 = sshll.u32 [#allocation5], 4
      %s28 = int_to_ptr.vmem [resolvable:$true] %s27
      %33 = dma.hbm_to_vmem [thread:$0]  %s1, 256, %s28, [#allocation6], 128, 128, 8
    $region9: #{tpu_custom_call.1} parent=1 // pred_fallthru
      _
    // Predicated region
    $region10: #{tpu_custom_call.1} parent=1 // pred_check
      _
    $region11: #{tpu_custom_call.1} parent=1 // pred_check_branch
      %35 = sbr.rel (0) target = $region13
    $region12: #{tpu_custom_call.1} parent=1 // pred_region
      %36 = dma.done [#allocation3], 256
    $region13: #{tpu_custom_call.1} parent=1 // pred_fallthru
      _
    // Predicated region
    $region14: #{tpu_custom_call.1} parent=1 // pred_check
      _
    $region15: #{tpu_custom_call.1} parent=1 // pred_check_branch
      %38 = sbr.rel (0) target = $region17
    $region16: #{tpu_custom_call.1} parent=1 // pred_region
      %39 = dma.done [#allocation6], 256
    $region17: #{tpu_custom_call.1} parent=1 // pred_fallthru
      _
    %v40 = vld [vmem:[#allocation2] sm:$0xff]
    %v41 = vld [vmem:[#allocation2 + $0x8] sm:$0xff]
    %v42 = vld [vmem:[#allocation5] sm:$0xff]
    %v43 = vld [vmem:[#allocation5 + $0x8] sm:$0xff]
    %v44 = vmax.f32 %v40, 0.0
    %v45 = vmax.f32 %v41, 0.0
    %v46 = vmul.f32 %v40, %v42
    %v47 = vmul.f32 %v41, %v43
    %v48 = vsub.f32 %v44, %v46
    %v49 = vsub.f32 %v45, %v47
    %v50 = vand.u32 2147483647, %v40
    %v51 = vand.u32 2147483647, %v41
    %v52 = vsub.f32 0.0, %v50
    %v53 = vsub.f32 0.0, %v51
    %v54 = vmul.f32 %v52, 1.442695
    %v55 = vpow.pop %v54
    %v56 = vmul.f32 %v53, 1.442695
    %v57 = vpow.pop %v56
    %v58 = vadd.f32 %v55, 1.0
    %v59 = vlog2.pop %v58
    %v60 = vmul.f32 %v59, 0.6931472
    %v61 = vmul.f32 -0.5, %v55
    %v62 = vadd.f32 %v61, 1.0
    %v63 = vmul.f32 %v62, %v55
    %v64 = vand.u32 2147483647, %v55
    %vm65 = vcmp.lt.f32.partialorder %v64, 0.0004427343
    %v66 = vsel %vm65, %v63, %v60
    %v67 = vadd.f32 %v57, 1.0
    %v68 = vlog2.pop %v67
    %v69 = vmul.f32 %v68, 0.6931472
    %v70 = vmul.f32 -0.5, %v57
    %v71 = vadd.f32 %v70, 1.0
    %v72 = vmul.f32 %v71, %v57
    %v73 = vand.u32 2147483647, %v57
    %vm74 = vcmp.lt.f32.partialorder %v73, 0.0004427343
    %v75 = vsel %vm74, %v72, %v69
    %v76 = vadd.f32 %v48, %v66
    %v77 = vadd.f32 %v49, %v75
    %vm78 = vcmp.ne.f32.partialorder %v42, 0.0
    %vm79 = vcmp.ne.f32.partialorder %v43, 0.0
    %v80 = vsel %vm78, 1.0, 0.0
    %v81 = vsel %vm79, 1.0, 0.0
    %v82 = vadd.f32 %v76, %v77
    %83 = vadd.xlane.f32.xlu0 %v82
    %v84 = vpop.xlane.xlu0 %83
    %v85 = vrot.slane %v84, 4
    %v86 = vadd.f32 %v84, %v85
    %v87 = vrot.slane %v86, 2
    %v88 = vadd.f32 %v86, %v87
    %v89 = vrot.slane %v88, 1
    %v90 = vadd.f32 %v88, %v89
    %s91 = vtos %v90
    %v92 = vadd.f32 %v80, %v81
    %93 = vadd.xlane.f32.xlu0 %v92
    %v94 = vpop.xlane.xlu0 %93
    %v95 = vrot.slane %v94, 4
    %v96 = vadd.f32 %v94, %v95
    %v97 = vrot.slane %v96, 2
    %v98 = vadd.f32 %v96, %v97
    %v99 = vrot.slane %v98, 1
    %v100 = vadd.f32 %v98, %v99
    %s101 = vtos %v100
    %s102 = ssub.f32 2048.0, %s101
    %p103 = scmp.gt.f32.partialorder %s102, 0.0
    %s104 = scalar_select %p103, %s102, 1.0
    %v105 = vstv %s104
    %v106 = vrcp.pop %v105
    %s107 = vtos %v106
    %s108 = smul.f32 %s101, %s107
    %s109 = smul.f32 %s108, %s91
    %s110 = smul.f32 %s109, 0.00048828125
    %s111 = scalar_lea.smem [#allocation7], 0
    %112 = sst [smem:[%s111]] %s110
    // Predicated region
    $region18: #{tpu_custom_call.1} parent=1 // pred_check
      _
    $region19: #{tpu_custom_call.1} parent=1 // pred_check_branch
      %114 = sbr.rel (0) target = $region21
    $region20: #{tpu_custom_call.1} parent=1 // pred_region
      %s116 = ssub.s32 16, 16
      %117 = vsyncadd [#allocation4], %s116
      %120 = dma.smem_to_hbm [#allocation7], 16, %s2, [#allocation4]
    $region21: #{tpu_custom_call.1} parent=1 // pred_fallthru
      _
    // Predicated region
    $region22: #{tpu_custom_call.1} parent=1 // pred_check
      _
    $region23: #{tpu_custom_call.1} parent=1 // pred_check_branch
      %122 = sbr.rel (0) target = $region25
    $region24: #{tpu_custom_call.1} parent=1 // pred_region
      %123 = dma.done [#allocation4], 16
    $region25: #{tpu_custom_call.1} parent=1 // pred_fallthru
      _
    %124 = sfence
    %125 = vsyncpa [#allocation3], 1
    %126 = vsyncpa [#allocation6], 1
    %127 = vsyncpa [#allocation4], 1

</llo_original>
